<compile_context>
chip_gen: v6e
topology: v6e:2x2x1
jax: 0.10.0
libtpu: 0.0.40
codegen_flags: <defaults>
</compile_context>

<pallas_src>
import jax
import jax.numpy as jnp
from jax import lax
from jax.experimental import pallas as pl
from jax.experimental.pallas import tpu as pltpu

_LANE = 128
_SUBLANE = 8
_TARGET_STEPS = 4        # aim for >= 4 grid steps (2 per v7x TensorCore)
_MIN_SPLIT_LANES = 512   # never shrink tiles below this just to add steps
_MIN_SPLIT_ROWS = 512


def _round_up(x, m):
    return ((x + m - 1) // m) * m


def _bytes_per_elem(itemsize):
    # double-buffered in + out blocks (input dtype) + ~2 full-block f32 temps
    return 4 * itemsize + 8


def _vmem_capacity_bytes():
    try:
        return int(pltpu.get_tpu_info().vmem_capacity_bytes)
    except Exception:
        return 64 * 1024 * 1024  # conservative default (v7x per-core VMEM)


def _default_budget():
    # ~50% of physical VMEM: 64 MiB on v5e/v6e (128 MiB parts), 32 MiB on v7x
    return _vmem_capacity_bytes() // 2


def _compiler_params(working_bytes, semantics):
    cap = _vmem_capacity_bytes()
    vmem_limit = int(min(cap, max(32 << 20, working_bytes + (16 << 20))))
    return pltpu.CompilerParams(dimension_semantics=semantics,
                                vmem_limit_bytes=vmem_limit)


# ----------------------------------------------------------------------------
# Main-path kernels: the full reduction axis is resident in the block.
# Single exp pass, exact divide (free under the HBM-bound roofline).
# ----------------------------------------------------------------------------
def _softmax_dim0_kernel(x_ref, o_ref):
    # x_ref: (N, td) block — full reduction axis (dim 0), a tile of lanes.
    x = x_ref[...]
    m = jnp.max(x, axis=0, keepdims=True)  # max in input dtype is exact
    e = jnp.exp(x.astype(jnp.float32) - m.astype(jnp.float32))
    s = jnp.sum(e, axis=0, keepdims=True)
    o_ref[...] = (e / s).astype(o_ref.dtype)


def _softmax_lastdim_kernel(x_ref, o_ref):
    # x_ref: (tr, D) block — full reduction axis (lanes), a tile of rows.
    x = x_ref[...]
    m = jnp.max(x, axis=-1, keepdims=True)
    e = jnp.exp(x.astype(jnp.float32) - m.astype(jnp.float32))
    s = jnp.sum(e, axis=-1, keepdims=True)
    o_ref[...] = (e / s).astype(o_ref.dtype)


# ----------------------------------------------------------------------------
# Fallback: reduction axis too large for VMEM even at minimal tile width.
# Two passes: (1) flash-style running (m, l) stats over an "arbitrary" grid
# axis, (2) elementwise normalize exp(x - m) / l.
# ----------------------------------------------------------------------------
def _softmax_dim0_tiled(x, budget):
    N, D = x.shape
    itemsize = jnp.dtype(x.dtype).itemsize
    bpe = _bytes_per_elem(itemsize)

    td = min(_MIN_SPLIT_LANES, _round_up(D, _LANE))
    if td >= D:
        td = D
    tn = (budget // (td * bpe)) // _SUBLANE * _SUBLANE
    tn = max(_SUBLANE, min(tn, _round_up(N, _SUBLANE)))
    if tn >= N:
        tn = N
    nj = pl.cdiv(D, td)
    nk = pl.cdiv(N, tn)

    def stats_kernel(x_ref, m_ref, l_ref):
        k = pl.program_id(1)

        @pl.when(k == 0)
        def _():
            m_ref[...] = jnp.full_like(m_ref, -jnp.inf)
            l_ref[...] = jnp.zeros_like(l_ref)

        xb = x_ref[...].astype(jnp.float32)
        # mask rows of the (possibly partial) last reduction block
        row = k * tn + lax.broadcasted_iota(jnp.int32, xb.shape, 0)
        xb = jnp.where(row < N, xb, -jnp.inf)
        m_old = m_ref[...]
        m_new = jnp.maximum(m_old, jnp.max(xb, axis=0, keepdims=True))
        alpha = jnp.where(m_old == -jnp.inf, 0.0, jnp.exp(m_old - m_new))
        p_sum = jnp.where(m_new == -jnp.inf, 0.0,
                          jnp.sum(jnp.exp(xb - m_new), axis=0, keepdims=True))
        l_ref[...] = alpha * l_ref[...] + p_sum
        m_ref[...] = m_new

    m, l = pl.pallas_call(
        stats_kernel,
        out_shape=(jax.ShapeDtypeStruct((1, D), jnp.float32),
                   jax.ShapeDtypeStruct((1, D), jnp.float32)),
        grid_spec=pltpu.PrefetchScalarGridSpec(
            num_scalar_prefetch=0,
            grid=(nj, nk),
            in_specs=[pl.BlockSpec((tn, td), lambda j, k: (k, j))],
            out_specs=[pl.BlockSpec((1, td), lambda j, k: (0, j)),
                       pl.BlockSpec((1, td), lambda j, k: (0, j))],
        ),
        compiler_params=_compiler_params(tn * td * bpe, ("parallel", "arbitrary")),
        cost_estimate=pl.CostEstimate(flops=3 * N * D, transcendentals=N * D,
                                      bytes_accessed=N * D * itemsize + 8 * D),
    )(x)

    def norm_kernel(x_ref, m_ref, l_ref, o_ref):
        e = jnp.exp(x_ref[...].astype(jnp.float32) - m_ref[...])
        o_ref[...] = (e / l_ref[...]).astype(o_ref.dtype)

    return pl.pallas_call(
        norm_kernel,
        out_shape=jax.ShapeDtypeStruct((N, D), x.dtype),
        grid_spec=pltpu.PrefetchScalarGridSpec(
            num_scalar_prefetch=0,
            grid=(nj, nk),
            in_specs=[pl.BlockSpec((tn, td), lambda j, k: (k, j)),
                      pl.BlockSpec((1, td), lambda j, k: (0, j)),
                      pl.BlockSpec((1, td), lambda j, k: (0, j))],
            out_specs=pl.BlockSpec((tn, td), lambda j, k: (k, j)),
        ),
        compiler_params=_compiler_params(tn * td * bpe, ("parallel", "parallel")),
        cost_estimate=pl.CostEstimate(flops=2 * N * D, transcendentals=N * D,
                                      bytes_accessed=2 * N * D * itemsize),
    )(x, m, l)


def _softmax_lastdim_tiled(x, budget):
    N, D = x.shape
    itemsize = jnp.dtype(x.dtype).itemsize
    bpe = _bytes_per_elem(itemsize)

    tr = min(_MIN_SPLIT_ROWS, _round_up(N, _SUBLANE))
    if tr >= N:
        tr = N
    tkd = (budget // (tr * bpe)) // _LANE * _LANE
    tkd = max(_LANE, min(tkd, _round_up(D, _LANE)))
    if tkd >= D:
        tkd = D
    ni = pl.cdiv(N, tr)
    nk = pl.cdiv(D, tkd)

    def stats_kernel(x_ref, m_ref, l_ref):
        k = pl.program_id(1)

        @pl.when(k == 0)
        def _():
            m_ref[...] = jnp.full_like(m_ref, -jnp.inf)
            l_ref[...] = jnp.zeros_like(l_ref)

        xb = x_ref[...].astype(jnp.float32)
        # mask lanes of the (possibly partial) last reduction block
        col = k * tkd + lax.broadcasted_iota(jnp.int32, xb.shape, 1)
        xb = jnp.where(col < D, xb, -jnp.inf)
        m_old = m_ref[...]
        m_new = jnp.maximum(m_old, jnp.max(xb, axis=-1, keepdims=True))
        alpha = jnp.where(m_old == -jnp.inf, 0.0, jnp.exp(m_old - m_new))
        p_sum = jnp.where(m_new == -jnp.inf, 0.0,
                          jnp.sum(jnp.exp(xb - m_new), axis=-1, keepdims=True))
        l_ref[...] = alpha * l_ref[...] + p_sum
        m_ref[...] = m_new

    m, l = pl.pallas_call(
        stats_kernel,
        out_shape=(jax.ShapeDtypeStruct((N, 1), jnp.float32),
                   jax.ShapeDtypeStruct((N, 1), jnp.float32)),
        grid_spec=pltpu.PrefetchScalarGridSpec(
            num_scalar_prefetch=0,
            grid=(ni, nk),
            in_specs=[pl.BlockSpec((tr, tkd), lambda i, k: (i, k))],
            out_specs=[pl.BlockSpec((tr, 1), lambda i, k: (i, 0)),
                       pl.BlockSpec((tr, 1), lambda i, k: (i, 0))],
        ),
        compiler_params=_compiler_params(tr * tkd * bpe, ("parallel", "arbitrary")),
        cost_estimate=pl.CostEstimate(flops=3 * N * D, transcendentals=N * D,
                                      bytes_accessed=N * D * itemsize + 8 * N),
    )(x)

    def norm_kernel(x_ref, m_ref, l_ref, o_ref):
        e = jnp.exp(x_ref[...].astype(jnp.float32) - m_ref[...])
        o_ref[...] = (e / l_ref[...]).astype(o_ref.dtype)

    return pl.pallas_call(
        norm_kernel,
        out_shape=jax.ShapeDtypeStruct((N, D), x.dtype),
        grid_spec=pltpu.PrefetchScalarGridSpec(
            num_scalar_prefetch=0,
            grid=(ni, nk),
            in_specs=[pl.BlockSpec((tr, tkd), lambda i, k: (i, k)),
                      pl.BlockSpec((tr, 1), lambda i, k: (i, 0)),
                      pl.BlockSpec((tr, 1), lambda i, k: (i, 0))],
            out_specs=pl.BlockSpec((tr, tkd), lambda i, k: (i, k)),
        ),
        compiler_params=_compiler_params(tr * tkd * bpe, ("parallel", "parallel")),
        cost_estimate=pl.CostEstimate(flops=2 * N * D, transcendentals=N * D,
                                      bytes_accessed=2 * N * D * itemsize),
    )(x, m, l)


# ----------------------------------------------------------------------------
# Wrappers: VMEM-budget-aware tile selection, ragged grids (no pad/slice).
# ----------------------------------------------------------------------------
def _softmax_dim0(x, lane_tile, budget):
    N, D = x.shape
    itemsize = jnp.dtype(x.dtype).itemsize
    bpe = _bytes_per_elem(itemsize)
    n_sub = _round_up(N, _SUBLANE)

    # Even a minimal (full-N, 128-lane) block exceeds the budget -> tile N.
    if n_sub * _LANE * bpe > budget:
        return _softmax_dim0_tiled(x, budget)

    max_td = max(_LANE, (budget // (n_sub * bpe)) // _LANE * _LANE)
    td0 = min(_round_up(lane_tile, _LANE), max_td, _round_up(D, _LANE))
    # target >= _TARGET_STEPS grid steps, but never shrink below 512 lanes
    split_td = _round_up(pl.cdiv(_round_up(D, _LANE), _TARGET_STEPS), _LANE)
    td = max(min(td0, split_td), min(_MIN_SPLIT_LANES, td0))
    if td >= D:
        td = D  # single full-width block (block dim == full array dim is legal)
    grid = (pl.cdiv(D, td),)

    return pl.pallas_call(
        _softmax_dim0_kernel,
        out_shape=jax.ShapeDtypeStruct((N, D), x.dtype),
        grid_spec=pltpu.PrefetchScalarGridSpec(
            num_scalar_prefetch=0,
            grid=grid,
            in_specs=[pl.BlockSpec((N, td), lambda j: (0, j))],
            out_specs=pl.BlockSpec((N, td), lambda j: (0, j)),
        ),
        compiler_params=_compiler_params(n_sub * td * bpe, ("parallel",)),
        cost_estimate=pl.CostEstimate(flops=4 * N * D, transcendentals=N * D,
                                      bytes_accessed=2 * N * D * itemsize),
    )(x)


def _softmax_lastdim(x, row_tile, budget):
    N, D = x.shape
    itemsize = jnp.dtype(x.dtype).itemsize
    bpe = _bytes_per_elem(itemsize)
    d_lane = _round_up(D, _LANE)

    # Even a minimal (8-row, full-D) block exceeds the budget -> tile D.
    if _SUBLANE * d_lane * bpe > budget:
        return _softmax_lastdim_tiled(x, budget)

    max_tr = max(_SUBLANE, (budget // (d_lane * bpe)) // _SUBLANE * _SUBLANE)
    tr0 = min(_round_up(row_tile, _SUBLANE), max_tr, _round_up(N, _SUBLANE))
    # target >= _TARGET_STEPS grid steps, but never shrink below 512 rows
    split_tr = _round_up(pl.cdiv(_round_up(N, _SUBLANE), _TARGET_STEPS), _SUBLANE)
    tr = max(min(tr0, split_tr), min(_MIN_SPLIT_ROWS, tr0))
    if tr >= N:
        tr = N
    grid = (pl.cdiv(N, tr),)

    return pl.pallas_call(
        _softmax_lastdim_kernel,
        out_shape=jax.ShapeDtypeStruct((N, D), x.dtype),
        grid_spec=pltpu.PrefetchScalarGridSpec(
            num_scalar_prefetch=0,
            grid=grid,
            in_specs=[pl.BlockSpec((tr, D), lambda i: (i, 0))],
            out_specs=pl.BlockSpec((tr, D), lambda i: (i, 0)),
        ),
        compiler_params=_compiler_params(tr * d_lane * bpe, ("parallel",)),
        cost_estimate=pl.CostEstimate(flops=4 * N * D, transcendentals=N * D,
                                      bytes_accessed=2 * N * D * itemsize),
    )(x)


def stable_softmax(x, dim=0, *, lane_tile=1024, row_tile=512, vmem_budget_bytes=None):
    """StableSoftmax forward: LogSoftmax(dim)(inputs).exp() for a 2-D input.

    dim=0 (PyTorch default) normalizes each column; dim=1/-1 each row.
    A column/row that is entirely -inf yields NaN, same as the reference.
    """
    assert x.ndim == 2, "this kernel handles 2-D inputs"
    budget = _default_budget() if vmem_budget_bytes is None else int(vmem_budget_bytes)
    if dim in (1, -1):
        return _softmax_lastdim(x, row_tile, budget)
    assert dim == 0, "dim must be 0, 1 or -1 for a 2-D input"
    return _softmax_dim0(x, lane_tile, budget)


def _reference(x, dim=0):
    return jnp.exp(jax.nn.log_softmax(x.astype(jnp.float32), axis=dim)).astype(x.dtype)


if __name__ == "__main__":
    key = jax.random.PRNGKey(0)
    k0, k1, k2, k3 = jax.random.split(key, 4)

    # instance-level logits: [num_instances, num_classes]-ish
    x = jax.random.normal(k0, (64, 256), dtype=jnp.float32) * 3.0
    y = jax.random.normal(k1, (10, 200), dtype=jnp.float32) * 3.0   # ragged
    z = jax.random.normal(k2, (16, 800), dtype=jnp.float32) * 3.0   # multi-block + ragged edge
    w = jax.random.normal(k3, (100, 64), dtype=jnp.float32) * 3.0   # multi-row-block ragged
    xb = x.astype(jnp.bfloat16)

    cases = [
        (stable_softmax(x, dim=0), _reference(x, 0), 0, 1e-5),
        (stable_softmax(x, dim=-1), _reference(x, -1), -1, 1e-5),
        (stable_softmax(y, dim=0), _reference(y, 0), 0, 1e-5),
        (stable_softmax(y, dim=1), _reference(y, 1), 1, 1e-5),
        (stable_softmax(z, dim=0, lane_tile=256), _reference(z, 0), 0, 1e-5),
        (stable_softmax(w, dim=1, row_tile=32), _reference(w, 1), 1, 1e-5),
        # bf16: max in bf16 (exact), exp/normalize in f32
        (stable_softmax(xb, dim=0), _reference(xb, 0), 0, 1e-2),
        # force the reduction-tiled two-pass fallback with tiny VMEM budgets
        (stable_softmax(x, dim=0, vmem_budget_bytes=150_000), _reference(x, 0), 0, 1e-5),
        (stable_softmax(y, dim=1, vmem_budget_bytes=40_000), _reference(y, 1), 1, 1e-5),
    ]

    for out, ref, axis, tol in cases:
        out = jax.block_until_ready(out)
        assert out.shape == ref.shape and out.dtype == ref.dtype
        assert jnp.allclose(out, ref, atol=tol, rtol=tol), "mismatch vs reference"
        sums = jnp.sum(out.astype(jnp.float32), axis=axis)
        assert jnp.allclose(sums, jnp.ones_like(sums), atol=max(tol, 1e-4)), \
            "softmax does not sum to 1"

    print("KERNEL_OK")
</pallas_src>

<mosaic_0001>
module attributes {stable_mosaic.version = 11 : i64} {
  func.func @_softmax_dim0_kernel(%arg0: i32, %arg1: memref<64x256xf32, #tpu.memory_space<vmem>>, %arg2: memref<64x256xf32, #tpu.memory_space<vmem>>) attributes {dimension_semantics = [#tpu.dimension_semantics<parallel>], iteration_bounds = array<i64: 1>, scalar_prefetch = 0 : i64, scratch_operands = 0 : i64, tpu.core_type = #tpu.core_type<tc>, window_params = [{transform_indices = @transform_0, window_bounds = array<i64: 64, 256>}, {transform_indices = @transform_1, window_bounds = array<i64: 64, 256>}]} {
    %c0 = arith.constant 0 : index
    %c0_0 = arith.constant 0 : index
    %0 = vector.load %arg1[%c0, %c0_0] : memref<64x256xf32, #tpu.memory_space<vmem>>, vector<64x256xf32>
    %cst = arith.constant dense<0xFF800000> : vector<256xf32>
    %1 = vector.multi_reduction <maximumf>, %0, %cst [0] : vector<64x256xf32> to vector<256xf32>
    %2 = vector.shape_cast %1 : vector<256xf32> to vector<1x256xf32>
    %3 = vector.broadcast %2 : vector<1x256xf32> to vector<64x256xf32>
    %4 = arith.subf %0, %3 : vector<64x256xf32>
    %5 = math.exp %4 : vector<64x256xf32>
    %cst_1 = arith.constant dense<0.000000e+00> : vector<256xf32>
    %6 = vector.multi_reduction <add>, %5, %cst_1 [0] : vector<64x256xf32> to vector<256xf32>
    %7 = vector.shape_cast %6 : vector<256xf32> to vector<1x256xf32>
    %8 = vector.broadcast %7 : vector<1x256xf32> to vector<64x256xf32>
    %9 = arith.divf %5, %8 : vector<64x256xf32>
    %c0_2 = arith.constant 0 : index
    %c0_3 = arith.constant 0 : index
    %10 = vector.load %arg2[%c0_2, %c0_3] : memref<64x256xf32, #tpu.memory_space<vmem>>, vector<64x256xf32>
    tpu.vector_store %arg2[%c0_2, %c0_3], %9 {strides = array<i32>} : memref<64x256xf32, #tpu.memory_space<vmem>>, vector<64x256xf32>,
    return
  }
  func.func @transform_0(%arg0: i32) -> (i32, i32) {
    %c0_i32 = arith.constant 0 : i32
    %c0_i32_0 = arith.constant 0 : i32
    return %c0_i32, %arg0 : i32, i32
  }
  func.func @transform_1(%arg0: i32) -> (i32, i32) {
    %c0_i32 = arith.constant 0 : i32
    %c0_i32_0 = arith.constant 0 : i32
    return %c0_i32, %arg0 : i32, i32
  }
}

</mosaic_0001>

<llo_original>
// kernel: tpu_custom_call.1
$region0: #{tpu_custom_call.1}
  #allocation0 [shape = 'u32[]', space=smem, size = 0x4, offset = 0x4, fixed_abs, tag = 'smem constant byte address 0x4 - core index']
  #allocation1 [shape = 'u32[144,128]{1,0:T(1,128)}', space=vmem, size = 0x12000, scoped, tag = 'internal scratch']
  %s0 = inlined_call_operand.hbm [shape: f32[64,256], index: 0, kind: input, shape index: {}]
  %s1 = inlined_call_operand.hbm [shape: f32[64,256], index: 1, kind: output, shape index: {}]
  %s2 = sld [smem:[#allocation0]]
  $region18: #{tpu_custom_call.1} parent=0
    _
  %s4 = ssub.s32 1, %s2
  %s5 = scalar_select 0, %s4, %s2
  $region1: #{tpu_custom_call.1} parent=0
    #allocation2 [shape = 'u8[65536]{0}', space=vmem, size = 0x10000, scoped, tag = 'input window, operand 0, single buffered']
    #allocation3 [shape = 's32[1]{0}', space=sflag, size = 0x4, scoped, tag = 'scoped memory for tpu_custom_call.1']
    #allocation4 [shape = 's32[1]{0}', space=sflag, size = 0x4, scoped, tag = 'scoped memory for tpu_custom_call.1']
    #allocation5 [shape = 'u8[65536]{0}', space=vmem, size = 0x10000, scoped, tag = 'output window, operand 0, single buffered']
    %6 = vsyncpa [#allocation3], 0
    %7 = vsyncpa [#allocation4], 0
    // Predicated region
    $region2: #{tpu_custom_call.1} parent=1 // pred_check
      _
    $region3: #{tpu_custom_call.1} parent=1 // pred_check_branch
      %9 = sbr.rel (0) target = $region5
    $region4: #{tpu_custom_call.1} parent=1 // pred_region
      %s11 = ssub.s32 2048, 2048
      %12 = vsyncadd [#allocation3], %s11
      %s13 = sshll.u32 [#allocation2], 4
      %s14 = int_to_ptr.vmem [resolvable:$true] %s13
      %19 = dma.hbm_to_vmem [thread:$0]  %s0, 2048, %s14, [#allocation3], 256, 256, 16
    $region5: #{tpu_custom_call.1} parent=1 // pred_fallthru
      _
    // Predicated region
    $region6: #{tpu_custom_call.1} parent=1 // pred_check
      _
    $region7: #{tpu_custom_call.1} parent=1 // pred_check_branch
      %21 = sbr.rel (0) target = $region9
    $region8: #{tpu_custom_call.1} parent=1 // pred_region
      %22 = dma.done [#allocation3], 2048
    $region9: #{tpu_custom_call.1} parent=1 // pred_fallthru
      _
    %v23 = vld [vmem:[#allocation2] sm:$0xff]
    %v24 = vld [vmem:[#allocation2 + $0x8] sm:$0xff]
    %v25 = vld [vmem:[#allocation2 + $0x10] sm:$0xff]
    %v26 = vld [vmem:[#allocation2 + $0x18] sm:$0xff]
    %v27 = vld [vmem:[#allocation2 + $0x20] sm:$0xff]
    %v28 = vld [vmem:[#allocation2 + $0x28] sm:$0xff]
    %v29 = vld [vmem:[#allocation2 + $0x30] sm:$0xff]
    %v30 = vld [vmem:[#allocation2 + $0x38] sm:$0xff]
    %v31 = vld [vmem:[#allocation2 + $0x40] sm:$0xff]
    %v32 = vld [vmem:[#allocation2 + $0x48] sm:$0xff]
    %v33 = vld [vmem:[#allocation2 + $0x50] sm:$0xff]
    %v34 = vld [vmem:[#allocation2 + $0x58] sm:$0xff]
    %v35 = vld [vmem:[#allocation2 + $0x60] sm:$0xff]
    %v36 = vld [vmem:[#allocation2 + $0x68] sm:$0xff]
    %v37 = vld [vmem:[#allocation2 + $0x70] sm:$0xff]
    %v38 = vld [vmem:[#allocation2 + $0x78] sm:$0xff]
    %v39 = vmax.f32 %v23, %v27
    %v40 = vmax.f32 %v25, %v29
    %v41 = vmax.f32 %v39, %v31
    %v42 = vmax.f32 %v40, %v33
    %v43 = vmax.f32 %v41, %v35
    %v44 = vmax.f32 %v42, %v37
    %v45 = vmax.f32 %v43, %v44
    %v46 = vrot.slane %v45, 4
    %v47 = vmax.f32 %v45, %v46
    %v48 = vrot.slane %v47, 2
    %v49 = vmax.f32 %v47, %v48
    %v50 = vrot.slane %v49, 1
    %v51 = vmax.f32 %v49, %v50
    %v52 = vmax.f32 %v24, %v28
    %v53 = vmax.f32 %v26, %v30
    %v54 = vmax.f32 %v52, %v32
    %v55 = vmax.f32 %v53, %v34
    %v56 = vmax.f32 %v54, %v36
    %v57 = vmax.f32 %v55, %v38
    %v58 = vmax.f32 %v56, %v57
    %v59 = vrot.slane %v58, 4
    %v60 = vmax.f32 %v58, %v59
    %v61 = vrot.slane %v60, 2
    %v62 = vmax.f32 %v60, %v61
    %v63 = vrot.slane %v62, 1
    %v64 = vmax.f32 %v62, %v63
    %v65 = vsub.f32 %v23, %v51
    %v66 = vsub.f32 %v24, %v64
    %v67 = vsub.f32 %v25, %v51
    %v68 = vsub.f32 %v26, %v64
    %v69 = vsub.f32 %v27, %v51
    %v70 = vsub.f32 %v28, %v64
    %v71 = vsub.f32 %v29, %v51
    %v72 = vsub.f32 %v30, %v64
    %v73 = vsub.f32 %v31, %v51
    %v74 = vsub.f32 %v32, %v64
    %v75 = vsub.f32 %v33, %v51
    %v76 = vsub.f32 %v34, %v64
    %v77 = vsub.f32 %v35, %v51
    %v78 = vsub.f32 %v36, %v64
    %v79 = vsub.f32 %v37, %v51
    %v80 = vsub.f32 %v38, %v64
    %v81 = vmul.f32 %v65, 1.442695
    %v82 = vpow.pop %v81
    %v83 = vmul.f32 %v66, 1.442695
    %v84 = vpow.pop %v83
    %v85 = vmul.f32 %v67, 1.442695
    %v86 = vpow.pop %v85
    %v87 = vmul.f32 %v68, 1.442695
    %v88 = vpow.pop %v87
    %v89 = vmul.f32 %v69, 1.442695
    %v90 = vpow.pop %v89
    %v91 = vmul.f32 %v70, 1.442695
    %v92 = vpow.pop %v91
    %v93 = vmul.f32 %v71, 1.442695
    %v94 = vpow.pop %v93
    %v95 = vmul.f32 %v72, 1.442695
    %v96 = vpow.pop %v95
    %v97 = vmul.f32 %v73, 1.442695
    %v98 = vpow.pop %v97
    %v99 = vmul.f32 %v74, 1.442695
    %v100 = vpow.pop %v99
    %v101 = vmul.f32 %v75, 1.442695
    %v102 = vpow.pop %v101
    %v103 = vmul.f32 %v76, 1.442695
    %v104 = vpow.pop %v103
    %v105 = vmul.f32 %v77, 1.442695
    %v106 = vpow.pop %v105
    %v107 = vmul.f32 %v78, 1.442695
    %v108 = vpow.pop %v107
    %v109 = vmul.f32 %v79, 1.442695
    %v110 = vpow.pop %v109
    %v111 = vmul.f32 %v80, 1.442695
    %v112 = vpow.pop %v111
    %v113 = vadd.f32 %v82, %v86
    %v114 = vadd.f32 %v113, %v90
    %v115 = vadd.f32 %v114, %v94
    %v116 = vadd.f32 %v115, %v98
    %v117 = vadd.f32 %v116, %v102
    %v118 = vadd.f32 %v117, %v106
    %v119 = vadd.f32 %v118, %v110
    %v120 = vrot.slane %v119, 4
    %v121 = vadd.f32 %v119, %v120
    %v122 = vrot.slane %v121, 2
    %v123 = vadd.f32 %v121, %v122
    %v124 = vrot.slane %v123, 1
    %v125 = vadd.f32 %v123, %v124
    %v126 = vadd.f32 %v84, %v88
    %v127 = vadd.f32 %v126, %v92
    %v128 = vadd.f32 %v127, %v96
    %v129 = vadd.f32 %v128, %v100
    %v130 = vadd.f32 %v129, %v104
    %v131 = vadd.f32 %v130, %v108
    %v132 = vadd.f32 %v131, %v112
    %v133 = vrot.slane %v132, 4
    %v134 = vadd.f32 %v132, %v133
    %v135 = vrot.slane %v134, 2
    %v136 = vadd.f32 %v134, %v135
    %v137 = vrot.slane %v136, 1
    %v138 = vadd.f32 %v136, %v137
    %v139 = vrcp.pop %v125
    %v140 = vmul.f32 %v82, %v139
    %v141 = vrcp.pop %v138
    %v142 = vmul.f32 %v84, %v141
    %v143 = vmul.f32 %v86, %v139
    %v144 = vmul.f32 %v88, %v141
    %v145 = vmul.f32 %v90, %v139
    %v146 = vmul.f32 %v92, %v141
    %v147 = vmul.f32 %v94, %v139
    %v148 = vmul.f32 %v96, %v141
    %v149 = vmul.f32 %v98, %v139
    %v150 = vmul.f32 %v100, %v141
    %v151 = vmul.f32 %v102, %v139
    %v152 = vmul.f32 %v104, %v141
    %v153 = vmul.f32 %v106, %v139
    %v154 = vmul.f32 %v108, %v141
    %v155 = vmul.f32 %v110, %v139
    %v156 = vmul.f32 %v112, %v141
    %157 = vst [vmem:[#allocation5] sm:$0xff] %v140
    %158 = vst [vmem:[#allocation5 + $0x8] sm:$0xff] %v142
    %159 = vst [vmem:[#allocation5 + $0x10] sm:$0xff] %v143
    %160 = vst [vmem:[#allocation5 + $0x18] sm:$0xff] %v144
    %161 = vst [vmem:[#allocation5 + $0x20] sm:$0xff] %v145
    %162 = vst [vmem:[#allocation5 + $0x28] sm:$0xff] %v146
    %163 = vst [vmem:[#allocation5 + $0x30] sm:$0xff] %v147
    %164 = vst [vmem:[#allocation5 + $0x38] sm:$0xff] %v148
    %165 = vst [vmem:[#allocation5 + $0x40] sm:$0xff] %v149
    %166 = vst [vmem:[#allocation5 + $0x48] sm:$0xff] %v150
    %167 = vst [vmem:[#allocation5 + $0x50] sm:$0xff] %v151
    %168 = vst [vmem:[#allocation5 + $0x58] sm:$0xff] %v152
    %169 = vst [vmem:[#allocation5 + $0x60] sm:$0xff] %v153
    %170 = vst [vmem:[#allocation5 + $0x68] sm:$0xff] %v154
    %171 = vst [vmem:[#allocation5 + $0x70] sm:$0xff] %v155
    %172 = vst [vmem:[#allocation5 + $0x78] sm:$0xff] %v156
    // Predicated region
    $region10: #{tpu_custom_call.1} parent=1 // pred_check
      _
    $region11: #{tpu_custom_call.1} parent=1 // pred_check_branch
      %174 = sbr.rel (0) target = $region13
    $region12: #{tpu_custom_call.1} parent=1 // pred_region
      %s176 = ssub.s32 2048, 2048
      %177 = vsyncadd [#allocation4], %s176
      %s178 = sshll.u32 [#allocation5], 4
      %s179 = int_to_ptr.vmem [resolvable:$true] %s178
      %184 = dma.vmem_to_hbm [thread:$0]  %s179, 2048, %s1, [#allocation4], 256, 256, 16
    $region13: #{tpu_custom_call.1} parent=1 // pred_fallthru
      _
    // Predicated region
    $region14: #{tpu_custom_call.1} parent=1 // pred_check
      _
    $region15: #{tpu_custom_call.1} parent=1 // pred_check_branch
      %186 = sbr.rel (0) target = $region17
    $region16: #{tpu_custom_call.1} parent=1 // pred_region
      %187 = dma.done [#allocation4], 2048
    $region17: #{tpu_custom_call.1} parent=1 // pred_fallthru
      _
    %188 = vsyncpa [#allocation3], 1
    %189 = vsyncpa [#allocation4], 1

</llo_original>
